<compile_context>
chip_gen: v6e
topology: v6e:2x2x1
jax: 0.10.0
libtpu: 0.0.40
codegen_flags: <defaults>
</compile_context>

<pallas_src>
import functools

import jax
import jax.numpy as jnp
from jax.experimental import pallas as pl
from jax.experimental.pallas import tpu as pltpu


def _rmsnorm_kernel(x_ref, w_ref, o_ref, *, epsilon):
    x = x_ref[...]                                    # (tm, H), input dtype
    xf = x.astype(jnp.float32)
    # variance = mean(x^2) over hidden axis, computed in float32.
    var = jnp.mean(xf * xf, axis=-1, keepdims=True)   # (tm, 1) f32
    inv = jax.lax.rsqrt(var + epsilon)                # (tm, 1) f32, EUP slot
    # Normalize in f32, scale by f32 weight, cast back to input dtype.
    # This is bit-compatible with the PyTorch module (mul in f32, cast last).
    y = w_ref[...].astype(jnp.float32) * (xf * inv)   # (tm, H) f32
    o_ref[...] = y.astype(o_ref.dtype)


def _vmem_capacity_bytes():
    """Physical per-core VMEM, with a device-kind-string fallback."""
    try:
        info = pltpu.get_tpu_info()
        cap = getattr(info, "vmem_capacity_bytes", None)
        if cap:
            return int(cap)
    except Exception:
        pass
    # Fallback by device kind: v7x has 64 MiB/TC; v5e/v6e have 128 MiB.
    try:
        kind = jax.devices()[0].device_kind.lower()
    except Exception:
        kind = ""
    if "v7" in kind:
        return 64 * 1024 * 1024
    return 128 * 1024 * 1024


def _pick_block_rows(rows, hidden, itemsize, pack, budget_bytes):
    """Largest row-tile whose double-buffered (in + out) footprint fits budget.

    No artificial max-row cap: per the tile-size sweep, bigger tiles keep this
    streaming kernel at the HBM roofline, and spare VMEM is best spent here.
    """
    per_row = 2 * hidden * itemsize               # in + out bytes per row (1 buf)
    per_row_vmem = 2 * per_row                    # double-buffered footprint
    br = budget_bytes // max(per_row_vmem, 1)
    # Don't exceed the (pack-rounded) actual number of rows for small inputs.
    rows_rounded = -(-rows // pack) * pack
    br = min(br, rows_rounded)
    br = (br // pack) * pack                      # sublane-pack aligned
    br = max(br, pack)
    return int(br)


def rmsnorm(x, weight, epsilon=1e-6, block_rows=None):
    """x: (..., hidden), weight: (hidden,). Returns same shape/dtype as x."""
    orig_shape = x.shape
    hidden = orig_shape[-1]
    x2d = x.reshape(-1, hidden)
    rows = x2d.shape[0]

    itemsize = jnp.dtype(x.dtype).itemsize
    w_itemsize = jnp.dtype(weight.dtype).itemsize
    # Sublane packing: 8 rows/f32, 16 rows/bf16, 32 rows/int8.
    pack = 8 * max(1, 4 // itemsize)

    vmem_cap = _vmem_capacity_bytes()             # 64 MiB (v7x) / 128 MiB (v5e/v6e)
    # ~60% of capacity for the double-buffered in+out tiles; the remaining
    # ~40% (>= ~16 MiB even on v7x) covers the weight block, internal scratch
    # and pipeline bookkeeping.
    buffer_budget = (vmem_cap * 3) // 5
    if block_rows is None:
        block_rows = _pick_block_rows(rows, hidden, itemsize, pack, buffer_budget)
    assert block_rows % pack == 0, "block_rows must be sublane-pack aligned"

    grid = pl.cdiv(rows, block_rows)

    # Scoped VMEM limit tied to the actual footprint (+ headroom), recomputed
    # from the final block_rows (also when caller-supplied).  Defaults are only
    # 16/32 MiB, which would otherwise force tiny, overhead-bound tiles.
    needed = 2 * 2 * block_rows * hidden * itemsize   # double-buffered in+out
    needed += 2 * hidden * w_itemsize                 # weight block (both bufs)
    assert needed <= vmem_cap, (
        f"block_rows={block_rows} needs {needed} B of VMEM, exceeds "
        f"capacity {vmem_cap} B")
    vmem_limit = int(min(vmem_cap, max(16 * 1024 * 1024,
                                       needed + 8 * 1024 * 1024)))

    # Bandwidth-dominated cost hint for XLA's scheduler.
    cost = pl.CostEstimate(
        flops=3 * rows * hidden,
        transcendentals=rows,
        bytes_accessed=2 * rows * hidden * itemsize + hidden * w_itemsize,
    )

    w2d = weight.reshape(1, hidden)
    kernel = functools.partial(_rmsnorm_kernel, epsilon=epsilon)

    out = pl.pallas_call(
        kernel,
        out_shape=jax.ShapeDtypeStruct((rows, hidden), x.dtype),
        grid_spec=pltpu.PrefetchScalarGridSpec(
            num_scalar_prefetch=0,
            grid=(grid,),
            in_specs=[
                pl.BlockSpec((block_rows, hidden), lambda i: (i, 0)),
                pl.BlockSpec((1, hidden), lambda i: (0, 0)),
            ],
            out_specs=pl.BlockSpec((block_rows, hidden), lambda i: (i, 0)),
        ),
        compiler_params=pltpu.CompilerParams(
            # Row-block axis is independent work -> shard across TCs where
            # the chip has more than one (v7x).
            dimension_semantics=("parallel",),
            vmem_limit_bytes=vmem_limit,
        ),
        cost_estimate=cost,
    )(x2d, w2d)

    return out.reshape(orig_shape)


def rmsnorm_ref(x, weight, epsilon=1e-6):
    xf = x.astype(jnp.float32)
    var = jnp.mean(xf * xf, axis=-1, keepdims=True)
    y = weight.astype(jnp.float32) * (xf * jax.lax.rsqrt(var + epsilon))
    return y.astype(x.dtype)


if __name__ == "__main__":
    key = jax.random.PRNGKey(0)
    kx1, kw1, kx2, kw2 = jax.random.split(key, 4)

    # Test 1: f32, lane-dense hidden (multiple of 128), even rows.
    batch, seq, hidden = 2, 8, 256
    x = jax.random.normal(kx1, (batch, seq, hidden), dtype=jnp.float32)
    weight = jnp.ones((hidden,), dtype=jnp.float32) + 0.01 * jnp.arange(
        hidden, dtype=jnp.float32)
    out = jax.block_until_ready(rmsnorm(x, weight, epsilon=1e-6))
    ref = rmsnorm_ref(x, weight, epsilon=1e-6)
    assert out.shape == x.shape and out.dtype == x.dtype
    assert jnp.allclose(out, ref, atol=1e-5, rtol=1e-5)

    # Test 2: bf16, ragged row count (exercises masked final block, no pad copy).
    batch2, seq2, hidden2 = 3, 5, 128
    x2 = jax.random.normal(kx2, (batch2, seq2, hidden2), dtype=jnp.bfloat16)
    weight2 = (jnp.ones((hidden2,), dtype=jnp.float32)
               + 0.01 * jnp.arange(hidden2, dtype=jnp.float32))
    out2 = jax.block_until_ready(rmsnorm(x2, weight2, epsilon=1e-6))
    ref2 = rmsnorm_ref(x2, weight2, epsilon=1e-6)
    assert out2.shape == x2.shape and out2.dtype == x2.dtype
    assert jnp.allclose(out2.astype(jnp.float32), ref2.astype(jnp.float32),
                        atol=2e-2, rtol=2e-2)

    # Test 3: explicit (caller-supplied) block_rows path, multi-step grid.
    batch3, seq3, hidden3 = 4, 16, 128
    x3 = jax.random.normal(kw1, (batch3, seq3, hidden3), dtype=jnp.float32)
    weight3 = jnp.ones((hidden3,), dtype=jnp.float32)
    out3 = jax.block_until_ready(rmsnorm(x3, weight3, epsilon=1e-6, block_rows=16))
    ref3 = rmsnorm_ref(x3, weight3, epsilon=1e-6)
    assert jnp.allclose(out3, ref3, atol=1e-5, rtol=1e-5)

    print("KERNEL_OK")
</pallas_src>

<mosaic_0001>
module attributes {stable_mosaic.version = 11 : i64} {
  func.func @_rmsnorm_kernel(%arg0: i32, %arg1: memref<16x256xf32, #tpu.memory_space<vmem>>, %arg2: memref<1x256xf32, #tpu.memory_space<vmem>>, %arg3: memref<16x256xf32, #tpu.memory_space<vmem>>) attributes {dimension_semantics = [#tpu.dimension_semantics<parallel>], iteration_bounds = array<i64: 1>, scalar_prefetch = 0 : i64, scratch_operands = 0 : i64, tpu.core_type = #tpu.core_type<tc>, window_params = [{transform_indices = @transform_0, window_bounds = array<i64: 16, 256>}, {pipeline_mode = #tpu.pipeline_mode<synchronous>, transform_indices = @transform_1, window_bounds = array<i64: 1, 256>}, {transform_indices = @transform_2, window_bounds = array<i64: 16, 256>}]} {
    %c0 = arith.constant 0 : index
    %c0_0 = arith.constant 0 : index
    %0 = vector.load %arg1[%c0, %c0_0] : memref<16x256xf32, #tpu.memory_space<vmem>>, vector<16x256xf32>
    %1 = arith.mulf %0, %0 : vector<16x256xf32>
    %cst = arith.constant dense<0.000000e+00> : vector<16xf32>
    %2 = vector.multi_reduction <add>, %1, %cst [1] : vector<16x256xf32> to vector<16xf32>
    %3 = vector.shape_cast %2 : vector<16xf32> to vector<16x1xf32>
    %cst_1 = arith.constant 2.560000e+02 : f32
    %4 = vector.broadcast %cst_1 : f32 to vector<16x1xf32>
    %5 = arith.divf %3, %4 : vector<16x1xf32>
    %cst_2 = arith.constant 9.99999997E-7 : f32
    %6 = vector.broadcast %cst_2 : f32 to vector<16x1xf32>
    %7 = arith.addf %5, %6 : vector<16x1xf32>
    %8 = math.rsqrt %7 : vector<16x1xf32>
    %c0_3 = arith.constant 0 : index
    %c0_4 = arith.constant 0 : index
    %9 = vector.load %arg2[%c0_3, %c0_4] : memref<1x256xf32, #tpu.memory_space<vmem>>, vector<1x256xf32>
    %10 = vector.broadcast %8 : vector<16x1xf32> to vector<16x256xf32>
    %11 = arith.mulf %0, %10 : vector<16x256xf32>
    %12 = vector.broadcast %9 : vector<1x256xf32> to vector<16x256xf32>
    %13 = arith.mulf %12, %11 : vector<16x256xf32>
    %c0_5 = arith.constant 0 : index
    %c0_6 = arith.constant 0 : index
    %14 = vector.load %arg3[%c0_5, %c0_6] : memref<16x256xf32, #tpu.memory_space<vmem>>, vector<16x256xf32>
    tpu.vector_store %arg3[%c0_5, %c0_6], %13 {strides = array<i32>} : memref<16x256xf32, #tpu.memory_space<vmem>>, vector<16x256xf32>,
    return
  }
  func.func @transform_0(%arg0: i32) -> (i32, i32) {
    %c0_i32 = arith.constant 0 : i32
    %c0_i32_0 = arith.constant 0 : i32
    return %arg0, %c0_i32 : i32, i32
  }
  func.func @transform_1(%arg0: i32) -> (i32, i32) {
    %c0_i32 = arith.constant 0 : i32
    %c0_i32_0 = arith.constant 0 : i32
    %c0_i32_1 = arith.constant 0 : i32
    return %c0_i32, %c0_i32_0 : i32, i32
  }
  func.func @transform_2(%arg0: i32) -> (i32, i32) {
    %c0_i32 = arith.constant 0 : i32
    %c0_i32_0 = arith.constant 0 : i32
    return %arg0, %c0_i32 : i32, i32
  }
}

</mosaic_0001>

<llo_original>
// kernel: tpu_custom_call.1
$region0: #{tpu_custom_call.1}
  #allocation0 [shape = 'u32[]', space=smem, size = 0x4, offset = 0x4, fixed_abs, tag = 'smem constant byte address 0x4 - core index']
  #allocation1 [shape = 'u32[144,128]{1,0:T(1,128)}', space=vmem, size = 0x12000, scoped, tag = 'internal scratch']
  %s0 = inlined_call_operand.hbm [shape: f32[16,256], index: 0, kind: input, shape index: {}]
  %s1 = inlined_call_operand.hbm [shape: f32[1,256], index: 1, kind: input, shape index: {}]
  %s2 = inlined_call_operand.hbm [shape: f32[16,256], index: 2, kind: output, shape index: {}]
  %s3 = sld [smem:[#allocation0]]
  $region26: #{tpu_custom_call.1} parent=0
    _
  %s5 = ssub.s32 1, %s3
  %s6 = scalar_select 0, %s5, %s3
  $region1: #{tpu_custom_call.1} parent=0
    #allocation2 [shape = 'u8[16384]{0}', space=vmem, size = 0x4000, scoped, tag = 'input window, operand 0, single buffered']
    #allocation3 [shape = 's32[1]{0}', space=sflag, size = 0x4, scoped, tag = 'scoped memory for tpu_custom_call.1']
    #allocation4 [shape = 's32[1]{0}', space=sflag, size = 0x4, scoped, tag = 'scoped memory for tpu_custom_call.1']
    #allocation5 [shape = 'u8[1024]{0}', space=vmem, size = 0x400, scoped, tag = 'input window, operand 1, single buffered']
    #allocation6 [shape = 's32[1]{0}', space=sflag, size = 0x4, scoped, tag = 'scoped memory for tpu_custom_call.1']
    #allocation7 [shape = 'u8[16384]{0}', space=vmem, size = 0x4000, scoped, tag = 'output window, operand 0, single buffered']
    %7 = vsyncpa [#allocation3], 0
    %8 = vsyncpa [#allocation6], 0
    %9 = vsyncpa [#allocation4], 0
    // Predicated region
    $region2: #{tpu_custom_call.1} parent=1 // pred_check
      _
    $region3: #{tpu_custom_call.1} parent=1 // pred_check_branch
      %11 = sbr.rel (0) target = $region5
    $region4: #{tpu_custom_call.1} parent=1 // pred_region
      %s13 = ssub.s32 512, 512
      %14 = vsyncadd [#allocation3], %s13
      %s15 = sshll.u32 [#allocation2], 4
      %s16 = int_to_ptr.vmem [resolvable:$true] %s15
      %21 = dma.hbm_to_vmem [thread:$0]  %s0, 512, %s16, [#allocation3], 256, 256, 16
    $region5: #{tpu_custom_call.1} parent=1 // pred_fallthru
      _
    // Predicated region
    $region6: #{tpu_custom_call.1} parent=1 // pred_check
      _
    $region7: #{tpu_custom_call.1} parent=1 // pred_check_branch
      %23 = sbr.rel (0) target = $region9
    $region8: #{tpu_custom_call.1} parent=1 // pred_region
      %s25 = ssub.s32 32, 32
      %26 = vsyncadd [#allocation6], %s25
      %s28 = sshll.u32 [#allocation5], 4
      %s29 = int_to_ptr.vmem [resolvable:$true] %s28
      %31 = dma.hbm_to_vmem [thread:$0]  %s1, 32, %s29, [#allocation6]
    $region9: #{tpu_custom_call.1} parent=1 // pred_fallthru
      _
    // Predicated region
    $region10: #{tpu_custom_call.1} parent=1 // pred_check
      _
    $region11: #{tpu_custom_call.1} parent=1 // pred_check_branch
      %33 = sbr.rel (0) target = $region13
    $region12: #{tpu_custom_call.1} parent=1 // pred_region
      %34 = dma.done [#allocation3], 512
    $region13: #{tpu_custom_call.1} parent=1 // pred_fallthru
      _
    // Predicated region
    $region14: #{tpu_custom_call.1} parent=1 // pred_check
      _
    $region15: #{tpu_custom_call.1} parent=1 // pred_check_branch
      %36 = sbr.rel (0) target = $region17
    $region16: #{tpu_custom_call.1} parent=1 // pred_region
      %37 = dma.done [#allocation6], 32
    $region17: #{tpu_custom_call.1} parent=1 // pred_fallthru
      _
    %v38 = vld [vmem:[#allocation2] sm:$0xff]
    %v39 = vld [vmem:[#allocation2 + $0x8] sm:$0xff]
    %v40 = vld [vmem:[#allocation2 + $0x10] sm:$0xff]
    %v41 = vld [vmem:[#allocation2 + $0x18] sm:$0xff]
    %v42 = vmul.f32 %v38, %v38
    %v43 = vmul.f32 %v39, %v39
    %v44 = vmul.f32 %v40, %v40
    %v45 = vmul.f32 %v41, %v41
    %v46 = vadd.f32 %v42, %v43
    %47 = vadd.xlane.f32.xlu0 %v46
    %v48 = vpop.xlane.xlu0 %47
    %v49 = vadd.f32 %v44, %v45
    %50 = vadd.xlane.f32.xlu0 %v49
    %v51 = vpop.xlane.xlu0 %50
    %v52 = vrcp.pop 256.0
    %v53 = vmul.f32 %v48, %v52
    %v54 = vmul.f32 %v51, %v52
    %v55 = vadd.f32 %v53, 1e-06
    %v56 = vadd.f32 %v54, 1e-06
    %v57 = vrsqrt.pop %v55
    %v58 = vrsqrt.pop %v56
    %v59 = vld [vmem:[#allocation5] sm:$0x3]
    %v60 = vmul.f32 %v38, %v57
    %v61 = vmul.f32 %v39, %v57
    %v62 = vmul.f32 %v40, %v58
    %v63 = vmul.f32 %v41, %v58
    %v65 = vlaneseq
    %v66 = vshrl.u32 %v65, 7
    %v67 = vsub.s32 0, %v66
    %v68 = vrot.slane %v59, %v67
    %v69 = vlaneseq
    %v70 = vshrl.u32 %v69, 7
    %v71 = vsub.s32 1, %v70
    %v72 = vrot.slane %v59, %v71
    %v75 = vmul.f32 %v68, %v60
    %v76 = vmul.f32 %v72, %v61
    %v77 = vmul.f32 %v68, %v62
    %v78 = vmul.f32 %v72, %v63
    %79 = vst [vmem:[#allocation7] sm:$0xff] %v75
    %80 = vst [vmem:[#allocation7 + $0x8] sm:$0xff] %v76
    %81 = vst [vmem:[#allocation7 + $0x10] sm:$0xff] %v77
    %82 = vst [vmem:[#allocation7 + $0x18] sm:$0xff] %v78
    // Predicated region
    $region18: #{tpu_custom_call.1} parent=1 // pred_check
      _
    $region19: #{tpu_custom_call.1} parent=1 // pred_check_branch
      %84 = sbr.rel (0) target = $region21
    $region20: #{tpu_custom_call.1} parent=1 // pred_region
      %s86 = ssub.s32 512, 512
      %87 = vsyncadd [#allocation4], %s86
      %s88 = sshll.u32 [#allocation7], 4
      %s89 = int_to_ptr.vmem [resolvable:$true] %s88
      %94 = dma.vmem_to_hbm [thread:$0]  %s89, 512, %s2, [#allocation4], 256, 256, 16
    $region21: #{tpu_custom_call.1} parent=1 // pred_fallthru
      _
    // Predicated region
    $region22: #{tpu_custom_call.1} parent=1 // pred_check
      _
    $region23: #{tpu_custom_call.1} parent=1 // pred_check_branch
      %96 = sbr.rel (0) target = $region25
    $region24: #{tpu_custom_call.1} parent=1 // pred_region
      %97 = dma.done [#allocation4], 512
    $region25: #{tpu_custom_call.1} parent=1 // pred_fallthru
      _
    %98 = vsyncpa [#allocation3], 1
    %99 = vsyncpa [#allocation6], 1
    %100 = vsyncpa [#allocation4], 1

</llo_original>
